<compile_context>
chip_gen: v5e
topology: v5e:2x2
jax: 0.10.0
libtpu: 0.0.40
codegen_flags: <defaults>
</compile_context>

<pallas_src>
import functools

import jax
import jax.numpy as jnp
from jax.experimental import pallas as pl
from jax.experimental.pallas import tpu as pltpu


_DEFAULT_VMEM_BYTES = 64 * 1024 * 1024


def _round_up(x: int, m: int) -> int:
    return ((x + m - 1) // m) * m


def _vmem_limit_bytes() -> int:
    """Scoped-VMEM limit: ~7/8 of physical capacity (v5e/v6e: 128 MiB, v7x: 64 MiB)."""
    try:
        info = pltpu.get_tpu_info()
        cap = int(getattr(info, "vmem_capacity_bytes", _DEFAULT_VMEM_BYTES))
        if cap <= 0:
            cap = _DEFAULT_VMEM_BYTES
    except Exception:  # conservative fallback if the query is unavailable
        cap = _DEFAULT_VMEM_BYTES
    return int(cap * 7 // 8)


def _pad_cast(x: jax.Array, rows: int, cols: int, dtype) -> jax.Array:
    """Zero-pad / cast only when needed, so pre-aligned operands cost nothing."""
    dtype = jnp.dtype(dtype)
    r, c = x.shape
    if (r, c) != (rows, cols):
        x = jnp.pad(x, ((0, rows - r), (0, cols - c)))
    if x.dtype != dtype:
        x = x.astype(dtype)
    return x


def _pick_row_tile(n_p: int, f: int, itemsize: int, vmem_limit: int) -> int:
    """Largest A row tile whose double-buffered stream + resident Z fits VMEM.

    On v7x (64 MiB VMEM) this automatically lands ~half the tile that v5e/v6e
    (128 MiB) would pick for the same N.
    """
    budget = (vmem_limit * 3) // 4
    resident = n_p * f * itemsize                    # Z = X @ W stays VMEM-resident
    for tm in (1024, 512, 256, 128):
        if n_p % tm != 0:
            continue
        need = resident + 2 * tm * n_p * itemsize + 2 * tm * f * 4
        if need <= budget:
            return tm
    # TODO(synk): if even a 128-row A tile does not fit (huge N), also tile the
    # contraction (column) dim with an f32 VMEM accumulator + pl.when init/finalize.
    return 128


# --------------------------------------------------------------------------- #
# Fused single-call path (small graphs: A_hat fully VMEM-resident, read once). #
# --------------------------------------------------------------------------- #
def _gcn_fused_kernel(a_ref, x_ref, w1_ref, w2_ref, o_ref):
    """Single-invocation fused 2-layer GCN. All operands are full VMEM blocks.

    a_ref : (Np, Np)       normalized adjacency (compute dtype)
    x_ref : (Np, Fin)      node features
    w1_ref: (Fin, Fhid)    layer-1 weight
    w2_ref: (Fhid, Fout)   layer-2 weight
    o_ref : (Np, Fout)     output (lane-dense: Fout multiple of 128), f32
    """
    a = a_ref[...]
    cd = a.dtype  # compute dtype fed to the MXU (bf16 default, f32 for checking)

    # Layer 1: h = relu(A_hat @ (X @ W1)), f32 accumulation on the MXU.
    xw1 = jnp.dot(x_ref[...], w1_ref[...], preferred_element_type=jnp.float32)
    h = jnp.dot(a, xw1.astype(cd), preferred_element_type=jnp.float32)
    h = jnp.maximum(h, 0.0)  # ReLU on the f32 accumulator (v5e-safe)

    # Layer 2: out = A_hat @ (h @ W2)
    hw2 = jnp.dot(h.astype(cd), w2_ref[...], preferred_element_type=jnp.float32)
    out = jnp.dot(a, hw2.astype(cd), preferred_element_type=jnp.float32)

    o_ref[...] = out.astype(o_ref.dtype)


def _gcn_fused(a_p, x_p, w1_p, w2_p, vmem_limit):
    n_p = a_p.shape[0]
    f_in_p = x_p.shape[1]
    f_hid_p = w1_p.shape[1]
    f_out_p = w2_p.shape[1]
    itemsize = a_p.dtype.itemsize
    cost = pl.CostEstimate(
        flops=int(2 * n_p * n_p * (f_hid_p + f_out_p)
                  + 2 * n_p * f_in_p * f_hid_p
                  + 2 * n_p * f_hid_p * f_out_p),
        transcendentals=0,
        bytes_accessed=int((n_p * n_p + n_p * f_in_p + f_in_p * f_hid_p
                            + f_hid_p * f_out_p) * itemsize + n_p * f_out_p * 4),
    )
    return pl.pallas_call(
        _gcn_fused_kernel,
        out_shape=jax.ShapeDtypeStruct((n_p, f_out_p), jnp.float32),
        in_specs=[
            pl.BlockSpec((n_p, n_p), lambda: (0, 0)),
            pl.BlockSpec((n_p, f_in_p), lambda: (0, 0)),
            pl.BlockSpec((f_in_p, f_hid_p), lambda: (0, 0)),
            pl.BlockSpec((f_hid_p, f_out_p), lambda: (0, 0)),
        ],
        out_specs=pl.BlockSpec((n_p, f_out_p), lambda: (0, 0)),
        compiler_params=pltpu.CompilerParams(vmem_limit_bytes=vmem_limit),
        cost_estimate=cost,
    )(a_p, x_p, w1_p, w2_p)


# --------------------------------------------------------------------------- #
# Row-tiled streaming path (larger graphs / v7x megacore).                     #
# --------------------------------------------------------------------------- #
def _dense_matmul_kernel(x_ref, w_ref, o_ref):
    o_ref[...] = jnp.dot(x_ref[...], w_ref[...],
                         preferred_element_type=jnp.float32).astype(o_ref.dtype)


def _dense_matmul(x, w, out_dtype, vmem_limit):
    """Small dense projection Z = X @ W (single VMEM block; N x F is tiny vs N^2)."""
    # TODO(synk): tile rows if N * F_in ever exceeds the VMEM budget.
    m, k = x.shape
    n = w.shape[1]
    cost = pl.CostEstimate(
        flops=int(2 * m * k * n),
        transcendentals=0,
        bytes_accessed=int((m * k + k * n) * x.dtype.itemsize
                           + m * n * jnp.dtype(out_dtype).itemsize),
    )
    return pl.pallas_call(
        _dense_matmul_kernel,
        out_shape=jax.ShapeDtypeStruct((m, n), out_dtype),
        in_specs=[pl.BlockSpec((m, k), lambda: (0, 0)),
                  pl.BlockSpec((k, n), lambda: (0, 0))],
        out_specs=pl.BlockSpec((m, n), lambda: (0, 0)),
        compiler_params=pltpu.CompilerParams(vmem_limit_bytes=vmem_limit),
        cost_estimate=cost,
    )(x, w)


def _a_propagate_kernel(a_ref, z_ref, o_ref, *, apply_relu):
    """One A row tile: o = [relu](A[tile, :] @ Z), f32 MXU accumulation."""
    acc = jnp.dot(a_ref[...], z_ref[...], preferred_element_type=jnp.float32)
    if apply_relu:
        acc = jnp.maximum(acc, 0.0)
    o_ref[...] = acc.astype(o_ref.dtype)


def _a_propagate(a, z, *, apply_relu, out_dtype, tm, vmem_limit):
    """Y = [relu](A @ Z): A streamed in (tm, N) row tiles over a "parallel" grid
    (both v7x TensorCores + software-pipelined DMA); Z and the weights-side stay
    VMEM-resident via index_map -> (0, 0)."""
    n_p = a.shape[0]
    f = z.shape[1]
    grid = (n_p // tm,)
    cost = pl.CostEstimate(
        flops=int(2 * n_p * n_p * f),
        transcendentals=0,
        bytes_accessed=int((n_p * n_p + n_p * f) * a.dtype.itemsize
                           + n_p * f * jnp.dtype(out_dtype).itemsize),
    )
    return pl.pallas_call(
        functools.partial(_a_propagate_kernel, apply_relu=apply_relu),
        out_shape=jax.ShapeDtypeStruct((n_p, f), out_dtype),
        grid=grid,
        in_specs=[pl.BlockSpec((tm, n_p), lambda i: (i, 0)),
                  pl.BlockSpec((n_p, f), lambda i: (0, 0))],
        out_specs=pl.BlockSpec((tm, f), lambda i: (i, 0)),
        compiler_params=pltpu.CompilerParams(
            dimension_semantics=("parallel",),
            vmem_limit_bytes=vmem_limit),
        cost_estimate=cost,
    )(a, z)


def _gcn_tiled(a_p, x_p, w1_p, w2_p, compute_dtype, vmem_limit):
    n_p = a_p.shape[0]
    f_hid_p = w1_p.shape[1]
    f_out_p = w2_p.shape[1]
    itemsize = jnp.dtype(compute_dtype).itemsize
    tm = _pick_row_tile(n_p, max(f_hid_p, f_out_p), itemsize, vmem_limit)

    # Layer 1: h = relu(A_hat @ (X @ W1))
    z1 = _dense_matmul(x_p, w1_p, compute_dtype, vmem_limit)          # (Np, Fhid)
    h = _a_propagate(a_p, z1, apply_relu=True, out_dtype=compute_dtype,
                     tm=tm, vmem_limit=vmem_limit)
    # Layer 2: out = A_hat @ (h @ W2)
    z2 = _dense_matmul(h, w2_p, compute_dtype, vmem_limit)            # (Np, Fout)
    return _a_propagate(a_p, z2, apply_relu=False, out_dtype=jnp.float32,
                        tm=tm, vmem_limit=vmem_limit)


# --------------------------------------------------------------------------- #
# Public forward + plain-JAX glue (adjacency normalization, per GCNConv.__init__)
# --------------------------------------------------------------------------- #
def gcn_forward(A_hat: jax.Array, X: jax.Array, W1: jax.Array, W2: jax.Array,
                *, compute_dtype=jnp.bfloat16, mode: str = "auto") -> jax.Array:
    """2-layer GCN forward: A_hat @ relu(A_hat @ X @ W1) @ W2.

    A_hat may be passed at its true (n, n) shape, or already padded to a multiple
    of 128 and cast to `compute_dtype` (preferred: avoids a full extra HBM pass
    over the dominant operand). X / W1 / W2 are passed unpadded (they are small).
    """
    if mode not in ("auto", "fused", "tiled"):
        raise ValueError(f"unknown mode: {mode}")

    n, f_in = X.shape
    f_hid = W1.shape[1]
    f_out = W2.shape[1]
    assert W1.shape[0] == f_in and W2.shape[0] == f_hid
    assert A_hat.shape[0] == A_hat.shape[1] and A_hat.shape[0] >= n

    compute_dtype = jnp.dtype(compute_dtype)
    itemsize = compute_dtype.itemsize
    n_p = _round_up(max(n, A_hat.shape[0]), 128)   # MXU-native node padding
    f_in_p = _round_up(f_in, 128)
    f_hid_p = _round_up(f_hid, 128)
    f_out_p = _round_up(f_out, 128)

    # No-ops when operands are already padded/cast (e.g. A_hat straight from
    # normalize_adjacency(..., pad_to=n_p, dtype=compute_dtype)).
    a_p = _pad_cast(A_hat, n_p, n_p, compute_dtype)
    x_p = _pad_cast(X, n_p, f_in_p, compute_dtype)
    w1_p = _pad_cast(W1, f_in_p, f_hid_p, compute_dtype)
    w2_p = _pad_cast(W2, f_hid_p, f_out_p, compute_dtype)

    vmem_limit = _vmem_limit_bytes()

    if mode == "auto":
        fused_bytes = (
            (n_p * n_p + n_p * f_in_p + f_in_p * f_hid_p + f_hid_p * f_out_p) * itemsize
            + 2 * n_p * (f_hid_p + f_out_p) * 4   # live f32 intermediates
            + n_p * f_out_p * 4                    # f32 output block
        )
        mode = "fused" if fused_bytes <= (vmem_limit * 3) // 4 else "tiled"

    if mode == "fused":
        out_p = _gcn_fused(a_p, x_p, w1_p, w2_p, vmem_limit)
    else:
        out_p = _gcn_tiled(a_p, x_p, w1_p, w2_p, compute_dtype, vmem_limit)

    return out_p[:n, :f_out]


def normalize_adjacency(A: jax.Array, *, pad_to: int | None = None,
                        dtype=jnp.float32) -> jax.Array:
    """A_hat = D^-1/2 (A + I) D^-1/2, matching GCNConv.__init__ (plain-JAX glue).

    With pad_to / dtype set, A_hat is emitted already zero-padded and in the
    kernel's compute dtype, so gcn_forward does not add a second HBM pass over it.
    """
    n = A.shape[0]
    a_hat = A.astype(jnp.float32) + jnp.eye(n, dtype=jnp.float32)
    deg = jnp.sum(a_hat, axis=1)
    d_inv_sqrt = 1.0 / jnp.sqrt(deg)
    a_hat = a_hat * d_inv_sqrt[:, None] * d_inv_sqrt[None, :]
    if pad_to is not None and pad_to > n:
        a_hat = jnp.pad(a_hat, ((0, pad_to - n), (0, pad_to - n)))
    return a_hat.astype(dtype)


if __name__ == "__main__":
    key = jax.random.PRNGKey(0)
    (k_adj, k_feat, k_w1, k_w2,
     k_adj2, k_feat2, k_w1b, k_w2b) = jax.random.split(key, 8)

    def make_graph(k_a, k_x, n, f_in):
        # Deterministic synthetic symmetric 0/1 adjacency (self loops added in normalize).
        upper = (jax.random.uniform(k_a, (n, n)) < 0.1).astype(jnp.float32)
        A = jnp.triu(upper, k=1)
        A = A + A.T
        X = jax.random.normal(k_x, (n, f_in), dtype=jnp.float32)
        return A, X

    def reference(A, X, W1, W2):
        A_hat = normalize_adjacency(A)  # f32, unpadded
        return A_hat @ jnp.maximum(A_hat @ (X @ W1), 0.0) @ W2

    def rel_err(out, ref):
        return float(jnp.max(jnp.abs(out - ref))
                     / jnp.maximum(jnp.max(jnp.abs(ref)), 1e-6))

    # ---- Small graph: fused single-call path (A_hat VMEM-resident, read once) ----
    n1, f_in1, f_hid1, f_out1 = 64, 32, 32, 16
    A1, X1 = make_graph(k_adj, k_feat, n1, f_in1)
    W1a = jax.random.uniform(k_w1, (f_in1, f_hid1), dtype=jnp.float32)   # torch.rand
    W2a = jax.random.uniform(k_w2, (f_hid1, f_out1), dtype=jnp.float32)
    ref1 = reference(A1, X1, W1a, W2a)

    # Default (bf16 MXU) path: A_hat produced pre-padded & pre-cast -> no extra HBM pass.
    A1_hat_c = normalize_adjacency(A1, pad_to=_round_up(n1, 128), dtype=jnp.bfloat16)
    out1 = jax.block_until_ready(jax.jit(gcn_forward)(A1_hat_c, X1, W1a, W2a))
    assert out1.shape == (n1, f_out1)
    assert rel_err(out1, ref1) < 3e-2, rel_err(out1, ref1)

    # f32 checking path (exact-ish); unpadded A_hat exercises the pad/cast fallback.
    gcn_f32 = jax.jit(functools.partial(gcn_forward, compute_dtype=jnp.float32))
    out1_f32 = jax.block_until_ready(gcn_f32(normalize_adjacency(A1), X1, W1a, W2a))
    assert rel_err(out1_f32, ref1) < 1e-3, rel_err(out1_f32, ref1)

    # ---- Medium graph: row-tiled streaming path ("parallel" grid over A row tiles) ----
    n2, f_in2, f_hid2, f_out2 = 320, 48, 64, 24
    A2, X2 = make_graph(k_adj2, k_feat2, n2, f_in2)
    W1b = jax.random.uniform(k_w1b, (f_in2, f_hid2), dtype=jnp.float32)
    W2b = jax.random.uniform(k_w2b, (f_hid2, f_out2), dtype=jnp.float32)
    ref2 = reference(A2, X2, W1b, W2b)

    gcn_tiled_f32 = jax.jit(functools.partial(gcn_forward, compute_dtype=jnp.float32,
                                              mode="tiled"))
    out2_f32 = jax.block_until_ready(gcn_tiled_f32(normalize_adjacency(A2), X2, W1b, W2b))
    assert out2_f32.shape == (n2, f_out2)
    assert rel_err(out2_f32, ref2) < 1e-3, rel_err(out2_f32, ref2)

    A2_hat_c = normalize_adjacency(A2, pad_to=_round_up(n2, 128), dtype=jnp.bfloat16)
    gcn_tiled_bf16 = jax.jit(functools.partial(gcn_forward, mode="tiled"))
    out2_bf16 = jax.block_until_ready(gcn_tiled_bf16(A2_hat_c, X2, W1b, W2b))
    assert out2_bf16.shape == (n2, f_out2)
    assert rel_err(out2_bf16, ref2) < 3e-2, rel_err(out2_bf16, ref2)

    print("KERNEL_OK")
</pallas_src>

<mosaic_0001>
module attributes {stable_mosaic.version = 11 : i64} {
  func.func @_gcn_fused_kernel(%arg0: memref<128x128xbf16, #tpu.memory_space<vmem>>, %arg1: memref<128x128xbf16, #tpu.memory_space<vmem>>, %arg2: memref<128x128xbf16, #tpu.memory_space<vmem>>, %arg3: memref<128x128xbf16, #tpu.memory_space<vmem>>, %arg4: memref<128x128xf32, #tpu.memory_space<vmem>>) attributes {dimension_semantics = [], scalar_prefetch = 0 : i64, scratch_operands = 0 : i64, tpu.core_type = #tpu.core_type<tc>} {
    %c0 = arith.constant 0 : index
    %c0_0 = arith.constant 0 : index
    %0 = vector.load %arg0[%c0, %c0_0] : memref<128x128xbf16, #tpu.memory_space<vmem>>, vector<128x128xbf16>
    %c0_1 = arith.constant 0 : index
    %c0_2 = arith.constant 0 : index
    %1 = vector.load %arg1[%c0_1, %c0_2] : memref<128x128xbf16, #tpu.memory_space<vmem>>, vector<128x128xbf16>
    %c0_3 = arith.constant 0 : index
    %c0_4 = arith.constant 0 : index
    %2 = vector.load %arg2[%c0_3, %c0_4] : memref<128x128xbf16, #tpu.memory_space<vmem>>, vector<128x128xbf16>
    %cst = arith.constant dense<0.000000e+00> : vector<128x128xf32>
    %3 = tpu.matmul %1, %2, %cst {dimension_numbers = #tpu.dot_dimension_numbers<[1], [0], [0], [1], [0, 0, 1, 1], [], []>} : vector<128x128xbf16>, vector<128x128xbf16>, vector<128x128xf32> -> vector<128x128xf32>
    %4 = arith.truncf %3 : vector<128x128xf32> to vector<128x128xbf16>
    %cst_5 = arith.constant dense<0.000000e+00> : vector<128x128xf32>
    %5 = tpu.matmul %0, %4, %cst_5 {dimension_numbers = #tpu.dot_dimension_numbers<[1], [0], [0], [1], [0, 0, 1, 1], [], []>} : vector<128x128xbf16>, vector<128x128xbf16>, vector<128x128xf32> -> vector<128x128xf32>
    %cst_6 = arith.constant 0.000000e+00 : f32
    %6 = vector.broadcast %cst_6 : f32 to vector<128x128xf32>
    %7 = arith.maximumf %5, %6 : vector<128x128xf32>
    %8 = arith.truncf %7 : vector<128x128xf32> to vector<128x128xbf16>
    %c0_7 = arith.constant 0 : index
    %c0_8 = arith.constant 0 : index
    %9 = vector.load %arg3[%c0_7, %c0_8] : memref<128x128xbf16, #tpu.memory_space<vmem>>, vector<128x128xbf16>
    %cst_9 = arith.constant dense<0.000000e+00> : vector<128x128xf32>
    %10 = tpu.matmul %8, %9, %cst_9 {dimension_numbers = #tpu.dot_dimension_numbers<[1], [0], [0], [1], [0, 0, 1, 1], [], []>} : vector<128x128xbf16>, vector<128x128xbf16>, vector<128x128xf32> -> vector<128x128xf32>
    %11 = arith.truncf %10 : vector<128x128xf32> to vector<128x128xbf16>
    %cst_10 = arith.constant dense<0.000000e+00> : vector<128x128xf32>
    %12 = tpu.matmul %0, %11, %cst_10 {dimension_numbers = #tpu.dot_dimension_numbers<[1], [0], [0], [1], [0, 0, 1, 1], [], []>} : vector<128x128xbf16>, vector<128x128xbf16>, vector<128x128xf32> -> vector<128x128xf32>
    %c0_11 = arith.constant 0 : index
    %c0_12 = arith.constant 0 : index
    %13 = vector.load %arg4[%c0_11, %c0_12] : memref<128x128xf32, #tpu.memory_space<vmem>>, vector<128x128xf32>
    tpu.vector_store %arg4[%c0_11, %c0_12], %12 {strides = array<i32>} : memref<128x128xf32, #tpu.memory_space<vmem>>, vector<128x128xf32>,
    return
  }
}

</mosaic_0001>

<llo_original>
// kernel: gcn_forward.1
$region0: #{gcn_forward.1}
  #allocation0 [shape = 'u32[]', space=smem, size = 0x4, offset = 0x4, fixed_abs, tag = 'smem constant byte address 0x4 - core index']
  #allocation1 [shape = 'u32[72,128]{1,0:T(1,128)}', space=vmem, size = 0x9000, scoped, tag = 'internal scratch']
  %s0 = inlined_call_operand.vmem [shape: bf16[128,128], index: 0, kind: input, shape index: {}]
  %s1 = inlined_call_operand.vmem [shape: bf16[128,128], index: 1, kind: input, shape index: {}]
  %s2 = inlined_call_operand.vmem [shape: bf16[128,128], index: 2, kind: input, shape index: {}]
  %s3 = inlined_call_operand.vmem [shape: bf16[128,128], index: 3, kind: input, shape index: {}]
  %s4 = inlined_call_operand.vmem [shape: f32[128,128], index: 4, kind: output, shape index: {}]
  %s5 = sld [smem:[#allocation0]]
  $region26: #{gcn_forward.1} parent=0
    _
  %s7 = ssub.s32 1, %s5
  %s8 = scalar_select 0, %s7, %s5
  // Predicated region
  $region2: #{gcn_forward.1} parent=0 // pred_check
    _
  $region3: #{gcn_forward.1} parent=0 // pred_check_branch
    %10 = sbr.rel (0) target = $region5
  $region4: #{gcn_forward.1} parent=0 // pred_region
    _
  $region5: #{gcn_forward.1} parent=0 // pred_fallthru
    _
  // Predicated region
  $region6: #{gcn_forward.1} parent=0 // pred_check
    _
  $region7: #{gcn_forward.1} parent=0 // pred_check_branch
    %12 = sbr.rel (0) target = $region9
  $region8: #{gcn_forward.1} parent=0 // pred_region
    _
  $region9: #{gcn_forward.1} parent=0 // pred_fallthru
    _
  // Predicated region
  $region10: #{gcn_forward.1} parent=0 // pred_check
    _
  $region11: #{gcn_forward.1} parent=0 // pred_check_branch
    %14 = sbr.rel (0) target = $region13
  $region12: #{gcn_forward.1} parent=0 // pred_region
    _
  $region13: #{gcn_forward.1} parent=0 // pred_fallthru
    _
  // Predicated region
  $region14: #{gcn_forward.1} parent=0 // pred_check
    _
  $region15: #{gcn_forward.1} parent=0 // pred_check_branch
    %16 = sbr.rel (0) target = $region17
  $region16: #{gcn_forward.1} parent=0 // pred_region
    _
  $region17: #{gcn_forward.1} parent=0 // pred_fallthru
    _
  %v17 = vld [vmem:[%s0] sm:$0xf]
  %v18 = vld [vmem:[%s0 + $0x4] sm:$0xf]
  %v19 = vld [vmem:[%s0 + $0x8] sm:$0xf]
  %v20 = vld [vmem:[%s0 + $0xc] sm:$0xf]
  %v21 = vld [vmem:[%s0 + $0x10] sm:$0xf]
  %v22 = vld [vmem:[%s0 + $0x14] sm:$0xf]
  %v23 = vld [vmem:[%s0 + $0x18] sm:$0xf]
  %v24 = vld [vmem:[%s0 + $0x1c] sm:$0xf]
  %v25 = vld [vmem:[%s0 + $0x20] sm:$0xf]
  %v26 = vld [vmem:[%s0 + $0x24] sm:$0xf]
  %v27 = vld [vmem:[%s0 + $0x28] sm:$0xf]
  %v28 = vld [vmem:[%s0 + $0x2c] sm:$0xf]
  %v29 = vld [vmem:[%s0 + $0x30] sm:$0xf]
  %v30 = vld [vmem:[%s0 + $0x34] sm:$0xf]
  %v31 = vld [vmem:[%s0 + $0x38] sm:$0xf]
  %v32 = vld [vmem:[%s0 + $0x3c] sm:$0xf]
  %v33 = vld [vmem:[%s1] sm:$0xf]
  %v34 = vld [vmem:[%s1 + $0x4] sm:$0xf]
  %v35 = vld [vmem:[%s1 + $0x8] sm:$0xf]
  %v36 = vld [vmem:[%s1 + $0xc] sm:$0xf]
  %v37 = vld [vmem:[%s1 + $0x10] sm:$0xf]
  %v38 = vld [vmem:[%s1 + $0x14] sm:$0xf]
  %v39 = vld [vmem:[%s1 + $0x18] sm:$0xf]
  %v40 = vld [vmem:[%s1 + $0x1c] sm:$0xf]
  %v41 = vld [vmem:[%s1 + $0x20] sm:$0xf]
  %v42 = vld [vmem:[%s1 + $0x24] sm:$0xf]
  %v43 = vld [vmem:[%s1 + $0x28] sm:$0xf]
  %v44 = vld [vmem:[%s1 + $0x2c] sm:$0xf]
  %v45 = vld [vmem:[%s1 + $0x30] sm:$0xf]
  %v46 = vld [vmem:[%s1 + $0x34] sm:$0xf]
  %v47 = vld [vmem:[%s1 + $0x38] sm:$0xf]
  %v48 = vld [vmem:[%s1 + $0x3c] sm:$0xf]
  %v49 = vld [vmem:[%s2] sm:$0xf]
  %v50 = vld [vmem:[%s2 + $0x4] sm:$0xf]
  %v51 = vld [vmem:[%s2 + $0x8] sm:$0xf]
  %v52 = vld [vmem:[%s2 + $0xc] sm:$0xf]
  %v53 = vld [vmem:[%s2 + $0x10] sm:$0xf]
  %v54 = vld [vmem:[%s2 + $0x14] sm:$0xf]
  %v55 = vld [vmem:[%s2 + $0x18] sm:$0xf]
  %v56 = vld [vmem:[%s2 + $0x1c] sm:$0xf]
  %v57 = vld [vmem:[%s2 + $0x20] sm:$0xf]
  %v58 = vld [vmem:[%s2 + $0x24] sm:$0xf]
  %v59 = vld [vmem:[%s2 + $0x28] sm:$0xf]
  %v60 = vld [vmem:[%s2 + $0x2c] sm:$0xf]
  %v61 = vld [vmem:[%s2 + $0x30] sm:$0xf]
  %v62 = vld [vmem:[%s2 + $0x34] sm:$0xf]
  %v63 = vld [vmem:[%s2 + $0x38] sm:$0xf]
  %v64 = vld [vmem:[%s2 + $0x3c] sm:$0xf]
  %v81 = vunpack.c.l.b16 %v33
  %v82 = vunpack.c.l.b16 %v34
  %v83 = vunpack.c.l.b16 %v35
  %v84 = vunpack.c.l.b16 %v36
  %v85 = vunpack.c.l.b16 %v37
  %v86 = vunpack.c.l.b16 %v38
  %v87 = vunpack.c.l.b16 %v39
  %v88 = vunpack.c.l.b16 %v40
  %v89 = vunpack.c.l.b16 %v41
  %v90 = vunpack.c.l.b16 %v42
  %v91 = vunpack.c.l.b16 %v43
  %v92 = vunpack.c.l.b16 %v44
  %v93 = vunpack.c.l.b16 %v45
  %v94 = vunpack.c.l.b16 %v46
  %v95 = vunpack.c.l.b16 %v47
  %v96 = vunpack.c.l.b16 %v48
  %v97 = vpack.c.b16 %v82, %v81
  %v98 = vpack.c.b16 %v84, %v83
  %v99 = vpack.c.b16 %v86, %v85
  %v100 = vpack.c.b16 %v88, %v87
  %v101 = vpack.c.b16 %v90, %v89
  %v102 = vpack.c.b16 %v92, %v91
  %v103 = vpack.c.b16 %v94, %v93
  %v104 = vpack.c.b16 %v96, %v95
  %v129 = vunpack.c.l.b16 %v49
  %v130 = vunpack.c.l.b16 %v50
  %v131 = vunpack.c.l.b16 %v51
  %v132 = vunpack.c.l.b16 %v52
  %v133 = vunpack.c.l.b16 %v53
  %v134 = vunpack.c.l.b16 %v54
  %v135 = vunpack.c.l.b16 %v55
  %v136 = vunpack.c.l.b16 %v56
  %v137 = vunpack.c.l.b16 %v57
  %v138 = vunpack.c.l.b16 %v58
  %v139 = vunpack.c.l.b16 %v59
  %v140 = vunpack.c.l.b16 %v60
  %v141 = vunpack.c.l.b16 %v61
  %v142 = vunpack.c.l.b16 %v62
  %v143 = vunpack.c.l.b16 %v63
  %v144 = vunpack.c.l.b16 %v64
  %v145 = vpack.c.b16 %v130, %v129
  %v146 = vpack.c.b16 %v132, %v131
  %v147 = vpack.c.b16 %v134, %v133
  %v148 = vpack.c.b16 %v136, %v135
  %v149 = vpack.c.b16 %v138, %v137
  %v150 = vpack.c.b16 %v140, %v139
  %v151 = vpack.c.b16 %v142, %v141
  %v152 = vpack.c.b16 %v144, %v143
  %161 = vmatpush.bf16.msra.mxu0 %v152
  %162 = vmatpush.bf16.msra.mxu0 %v151
  %163 = vmatpush.bf16.msra.mxu0 %v150
  %164 = vmatpush.bf16.msra.mxu0 %v149
  %165 = vmatpush.bf16.msra.mxu0 %v148
  %166 = vmatpush.bf16.msra.mxu0 %v147
  %167 = vmatpush.bf16.msra.mxu0 %v146
  %168 = vmatpush.bf16.msra.mxu0 %v145
  %169 = vmatmul.bf16.gmra.mxu0 %v97
  %v170 = vpop.f32.mrf.mxu0
  %v171 = vadd.f32 0.0, %v170
  %v172 = vpop.f32.mrf.mxu0
  %v173 = vadd.f32 0.0, %v172
  %174 = vmatmul.bf16.gmra.mxu0 %v98
  %v175 = vpop.f32.mrf.mxu0
  %v176 = vadd.f32 0.0, %v175
  %v177 = vpop.f32.mrf.mxu0
  %v178 = vadd.f32 0.0, %v177
  %179 = vmatmul.bf16.gmra.mxu0 %v99
  %v180 = vpop.f32.mrf.mxu0
  %v181 = vadd.f32 0.0, %v180
  %v182 = vpop.f32.mrf.mxu0
  %v183 = vadd.f32 0.0, %v182
  %184 = vmatmul.bf16.gmra.mxu0 %v100
  %v185 = vpop.f32.mrf.mxu0
  %v186 = vadd.f32 0.0, %v185
  %v187 = vpop.f32.mrf.mxu0
  %v188 = vadd.f32 0.0, %v187
  %189 = vmatmul.bf16.gmra.mxu0 %v101
  %v190 = vpop.f32.mrf.mxu0
  %v191 = vadd.f32 0.0, %v190
  %v192 = vpop.f32.mrf.mxu0
  %v193 = vadd.f32 0.0, %v192
  %194 = vmatmul.bf16.gmra.mxu0 %v102
  %v195 = vpop.f32.mrf.mxu0
  %v196 = vadd.f32 0.0, %v195
  %v197 = vpop.f32.mrf.mxu0
  %v198 = vadd.f32 0.0, %v197
  %199 = vmatmul.bf16.gmra.mxu0 %v103
  %v200 = vpop.f32.mrf.mxu0
  %v201 = vadd.f32 0.0, %v200
  %v202 = vpop.f32.mrf.mxu0
  %v203 = vadd.f32 0.0, %v202
  %204 = vmatmul.bf16.gmra.mxu0 %v104
  %v205 = vpop.f32.mrf.mxu0
  %v206 = vadd.f32 0.0, %v205
  %v207 = vpop.f32.mrf.mxu0
  %v208 = vadd.f32 0.0, %v207
  %209 = vdwg.mxu0
  %v210 = vpack.c.bf16 %v173, %v171
  %v211 = vpack.c.bf16 %v178, %v176
  %v212 = vpack.c.bf16 %v183, %v181
  %v213 = vpack.c.bf16 %v188, %v186
  %v214 = vpack.c.bf16 %v193, %v191
  %v215 = vpack.c.bf16 %v198, %v196
  %v216 = vpack.c.bf16 %v203, %v201
  %v217 = vpack.c.bf16 %v208, %v206
  %v234 = vunpack.c.l.b16 %v17
  %v235 = vunpack.c.l.b16 %v18
  %v236 = vunpack.c.l.b16 %v19
  %v237 = vunpack.c.l.b16 %v20
  %v238 = vunpack.c.l.b16 %v21
  %v239 = vunpack.c.l.b16 %v22
  %v240 = vunpack.c.l.b16 %v23
  %v241 = vunpack.c.l.b16 %v24
  %v242 = vunpack.c.l.b16 %v25
  %v243 = vunpack.c.l.b16 %v26
  %v244 = vunpack.c.l.b16 %v27
  %v245 = vunpack.c.l.b16 %v28
  %v246 = vunpack.c.l.b16 %v29
  %v247 = vunpack.c.l.b16 %v30
  %v248 = vunpack.c.l.b16 %v31
  %v249 = vunpack.c.l.b16 %v32
  %v250 = vpack.c.b16 %v235, %v234
  %v251 = vpack.c.b16 %v237, %v236
  %v252 = vpack.c.b16 %v239, %v238
  %v253 = vpack.c.b16 %v241, %v240
  %v254 = vpack.c.b16 %v243, %v242
  %v255 = vpack.c.b16 %v245, %v244
  %v256 = vpack.c.b16 %v247, %v246
  %v257 = vpack.c.b16 %v249, %v248
  %266 = vmatpush.bf16.msra.mxu0 %v217
  %267 = vmatpush.bf16.msra.mxu0 %v216
  %268 = vmatpush.bf16.msra.mxu0 %v215
  %269 = vmatpush.bf16.msra.mxu0 %v214
  %270 = vmatpush.bf16.msra.mxu0 %v213
  %271 = vmatpush.bf16.msra.mxu0 %v212
  %272 = vmatpush.bf16.msra.mxu0 %v211
  %273 = vmatpush.bf16.msra.mxu0 %v210
  %274 = vmatmul.bf16.gmra.mxu0 %v250
  %v275 = vpop.f32.mrf.mxu0
  %v276 = vadd.f32 0.0, %v275
  %v277 = vpop.f32.mrf.mxu0
  %v278 = vadd.f32 0.0, %v277
  %279 = vmatmul.bf16.gmra.mxu0 %v251
  %v280 = vpop.f32.mrf.mxu0
  %v281 = vadd.f32 0.0, %v280
  %v282 = vpop.f32.mrf.mxu0
  %v283 = vadd.f32 0.0, %v282
  %284 = vmatmul.bf16.gmra.mxu0 %v252
  %v285 = vpop.f32.mrf.mxu0
  %v286 = vadd.f32 0.0, %v285
  %v287 = vpop.f32.mrf.mxu0
  %v288 = vadd.f32 0.0, %v287
  %289 = vmatmul.bf16.gmra.mxu0 %v253
  %v290 = vpop.f32.mrf.mxu0
  %v291 = vadd.f32 0.0, %v290
  %v292 = vpop.f32.mrf.mxu0
  %v293 = vadd.f32 0.0, %v292
  %294 = vmatmul.bf16.gmra.mxu0 %v254
  %v295 = vpop.f32.mrf.mxu0
  %v296 = vadd.f32 0.0, %v295
  %v297 = vpop.f32.mrf.mxu0
  %v298 = vadd.f32 0.0, %v297
  %299 = vmatmul.bf16.gmra.mxu0 %v255
  %v300 = vpop.f32.mrf.mxu0
  %v301 = vadd.f32 0.0, %v300
  %v302 = vpop.f32.mrf.mxu0
  %v303 = vadd.f32 0.0, %v302
  %304 = vmatmul.bf16.gmra.mxu0 %v256
  %v305 = vpop.f32.mrf.mxu0
  %v306 = vadd.f32 0.0, %v305
  %v307 = vpop.f32.mrf.mxu0
  %v308 = vadd.f32 0.0, %v307
  %309 = vmatmul.bf16.gmra.mxu0 %v257
  %v310 = vpop.f32.mrf.mxu0
  %v311 = vadd.f32 0.0, %v310
  %v312 = vpop.f32.mrf.mxu0
  %v313 = vadd.f32 0.0, %v312
  %314 = vdwg.mxu0
  %v315 = vmax.f32 %v276, 0.0
  %v316 = vmax.f32 %v278, 0.0
  %v317 = vmax.f32 %v281, 0.0
  %v318 = vmax.f32 %v283, 0.0
  %v319 = vmax.f32 %v286, 0.0
  %v320 = vmax.f32 %v288, 0.0
  %v321 = vmax.f32 %v291, 0.0
  %v322 = vmax.f32 %v293, 0.0
  %v323 = vmax.f32 %v296, 0.0
  %v324 = vmax.f32 %v298, 0.0
  %v325 = vmax.f32 %v301, 0.0
  %v326 = vmax.f32 %v303, 0.0
  %v327 = vmax.f32 %v306, 0.0
  %v328 = vmax.f32 %v308, 0.0
  %v329 = vmax.f32 %v311, 0.0
  %v330 = vmax.f32 %v313, 0.0
  %v331 = vpack.c.bf16 %v316, %v315
  %v332 = vpack.c.bf16 %v318, %v317
  %v333 = vpack.c.bf16 %v320, %v319
  %v334 = vpack.c.bf16 %v322, %v321
  %v335 = vpack.c.bf16 %v324, %v323
  %v336 = vpack.c.bf16 %v326, %v325
  %v337 = vpack.c.bf16 %v328, %v327
  %v338 = vpack.c.bf16 %v330, %v329
  %v339 = vld [vmem:[%s3] sm:$0xf]
  %v340 = vld [vmem:[%s3 + $0x4] sm:$0xf]
  %v341 = vld [vmem:[%s3 + $0x8] sm:$0xf]
  %v342 = vld [vmem:[%s3 + $0xc] sm:$0xf]
  %v343 = vld [vmem:[%s3 + $0x10] sm:$0xf]
  %v344 = vld [vmem:[%s3 + $0x14] sm:$0xf]
  %v345 = vld [vmem:[%s3 + $0x18] sm:$0xf]
  %v346 = vld [vmem:[%s3 + $0x1c] sm:$0xf]
  %v347 = vld [vmem:[%s3 + $0x20] sm:$0xf]
  %v348 = vld [vmem:[%s3 + $0x24] sm:$0xf]
  %v349 = vld [vmem:[%s3 + $0x28] sm:$0xf]
  %v350 = vld [vmem:[%s3 + $0x2c] sm:$0xf]
  %v351 = vld [vmem:[%s3 + $0x30] sm:$0xf]
  %v352 = vld [vmem:[%s3 + $0x34] sm:$0xf]
  %v353 = vld [vmem:[%s3 + $0x38] sm:$0xf]
  %v354 = vld [vmem:[%s3 + $0x3c] sm:$0xf]
  %v371 = vunpack.c.l.b16 %v339
  %v372 = vunpack.c.l.b16 %v340
  %v373 = vunpack.c.l.b16 %v341
  %v374 = vunpack.c.l.b16 %v342
  %v375 = vunpack.c.l.b16 %v343
  %v376 = vunpack.c.l.b16 %v344
  %v377 = vunpack.c.l.b16 %v345
  %v378 = vunpack.c.l.b16 %v346
  %v379 = vunpack.c.l.b16 %v347
  %v380 = vunpack.c.l.b16 %v348
  %v381 = vunpack.c.l.b16 %v349
  %v382 = vunpack.c.l.b16 %v350
  %v383 = vunpack.c.l.b16 %v351
  %v384 = vunpack.c.l.b16 %v352
  %v385 = vunpack.c.l.b16 %v353
  %v386 = vunpack.c.l.b16 %v354
  %v387 = vpack.c.b16 %v372, %v371
  %v388 = vpack.c.b16 %v374, %v373
  %v389 = vpack.c.b16 %v376, %v375
  %v390 = vpack.c.b16 %v378, %v377
  %v391 = vpack.c.b16 %v380, %v379
  %v392 = vpack.c.b16 %v382, %v381
  %v393 = vpack.c.b16 %v384, %v383
  %v394 = vpack.c.b16 %v386, %v385
  %403 = vmatpush.bf16.msra.mxu0 %v394
  %404 = vmatpush.bf16.msra.mxu0 %v393
  %405 = vmatpush.bf16.msra.mxu0 %v392
  %406 = vmatpush.bf16.msra.mxu0 %v391
  %407 = vmatpush.bf16.msra.mxu0 %v390
  %408 = vmatpush.bf16.msra.mxu0 %v389
  %409 = vmatpush.bf16.msra.mxu0 %v388
  %410 = vmatpush.bf16.msra.mxu0 %v387
  %411 = vmatmul.bf16.gmra.mxu0 %v331
  %v412 = vpop.f32.mrf.mxu0
  %v413 = vadd.f32 0.0, %v412
  %v414 = vpop.f32.mrf.mxu0
  %v415 = vadd.f32 0.0, %v414
  %416 = vmatmul.bf16.gmra.mxu0 %v332
  %v417 = vpop.f32.mrf.mxu0
  %v418 = vadd.f32 0.0, %v417
  %v419 = vpop.f32.mrf.mxu0
  %v420 = vadd.f32 0.0, %v419
  %421 = vmatmul.bf16.gmra.mxu0 %v333
  %v422 = vpop.f32.mrf.mxu0
  %v423 = vadd.f32 0.0, %v422
  %v424 = vpop.f32.mrf.mxu0
  %v425 = vadd.f32 0.0, %v424
  %426 = vmatmul.bf16.gmra.mxu0 %v334
  %v427 = vpop.f32.mrf.mxu0
  %v428 = vadd.f32 0.0, %v427
  %v429 = vpop.f32.mrf.mxu0
  %v430 = vadd.f32 0.0, %v429
  %431 = vmatmul.bf16.gmra.mxu0 %v335
  %v432 = vpop.f32.mrf.mxu0
  %v433 = vadd.f32 0.0, %v432
  %v434 = vpop.f32.mrf.mxu0
  %v435 = vadd.f32 0.0, %v434
  %436 = vmatmul.bf16.gmra.mxu0 %v336
  %v437 = vpop.f32.mrf.mxu0
  %v438 = vadd.f32 0.0, %v437
  %v439 = vpop.f32.mrf.mxu0
  %v440 = vadd.f32 0.0, %v439
  %441 = vmatmul.bf16.gmra.mxu0 %v337
  %v442 = vpop.f32.mrf.mxu0
  %v443 = vadd.f32 0.0, %v442
  %v444 = vpop.f32.mrf.mxu0
  %v445 = vadd.f32 0.0, %v444
  %446 = vmatmul.bf16.gmra.mxu0 %v338
  %v447 = vpop.f32.mrf.mxu0
  %v448 = vadd.f32 0.0, %v447
  %v449 = vpop.f32.mrf.mxu0
  %v450 = vadd.f32 0.0, %v449
  %451 = vdwg.mxu0
  %v452 = vpack.c.bf16 %v415, %v413
  %v453 = vpack.c.bf16 %v420, %v418
  %v454 = vpack.c.bf16 %v425, %v423
  %v455 = vpack.c.bf16 %v430, %v428
  %v456 = vpack.c.bf16 %v435, %v433
  %v457 = vpack.c.bf16 %v440, %v438
  %v458 = vpack.c.bf16 %v445, %v443
  %v459 = vpack.c.bf16 %v450, %v448
  %460 = vmatpush.bf16.msra.mxu0 %v459
  %461 = vmatpush.bf16.msra.mxu0 %v458
  %462 = vmatpush.bf16.msra.mxu0 %v457
  %463 = vmatpush.bf16.msra.mxu0 %v456
  %464 = vmatpush.bf16.msra.mxu0 %v455
  %465 = vmatpush.bf16.msra.mxu0 %v454
  %466 = vmatpush.bf16.msra.mxu0 %v453
  %467 = vmatpush.bf16.msra.mxu0 %v452
  %468 = vmatmul.bf16.gmra.mxu0 %v250
  %v469 = vpop.f32.mrf.mxu0
  %v470 = vadd.f32 0.0, %v469
  %v471 = vpop.f32.mrf.mxu0
  %v472 = vadd.f32 0.0, %v471
  %473 = vmatmul.bf16.gmra.mxu0 %v251
  %v474 = vpop.f32.mrf.mxu0
  %v475 = vadd.f32 0.0, %v474
  %v476 = vpop.f32.mrf.mxu0
  %v477 = vadd.f32 0.0, %v476
  %478 = vmatmul.bf16.gmra.mxu0 %v252
  %v479 = vpop.f32.mrf.mxu0
  %v480 = vadd.f32 0.0, %v479
  %v481 = vpop.f32.mrf.mxu0
  %v482 = vadd.f32 0.0, %v481
  %483 = vmatmul.bf16.gmra.mxu0 %v253
  %v484 = vpop.f32.mrf.mxu0
  %v485 = vadd.f32 0.0, %v484
  %v486 = vpop.f32.mrf.mxu0
  %v487 = vadd.f32 0.0, %v486
  %488 = vmatmul.bf16.gmra.mxu0 %v254
  %v489 = vpop.f32.mrf.mxu0
  %v490 = vadd.f32 0.0, %v489
  %v491 = vpop.f32.mrf.mxu0
  %v492 = vadd.f32 0.0, %v491
  %493 = vmatmul.bf16.gmra.mxu0 %v255
  %v494 = vpop.f32.mrf.mxu0
  %v495 = vadd.f32 0.0, %v494
  %v496 = vpop.f32.mrf.mxu0
  %v497 = vadd.f32 0.0, %v496
  %498 = vmatmul.bf16.gmra.mxu0 %v256
  %v499 = vpop.f32.mrf.mxu0
  %v500 = vadd.f32 0.0, %v499
  %v501 = vpop.f32.mrf.mxu0
  %v502 = vadd.f32 0.0, %v501
  %503 = vmatmul.bf16.gmra.mxu0 %v257
  %v504 = vpop.f32.mrf.mxu0
  %v505 = vadd.f32 0.0, %v504
  %v506 = vpop.f32.mrf.mxu0
  %v507 = vadd.f32 0.0, %v506
  %508 = vdwg.mxu0
  %509 = vst [vmem:[%s4] sm:$0xff] %v470
  %510 = vst [vmem:[%s4 + $0x8] sm:$0xff] %v472
  %511 = vst [vmem:[%s4 + $0x10] sm:$0xff] %v475
  %512 = vst [vmem:[%s4 + $0x18] sm:$0xff] %v477
  %513 = vst [vmem:[%s4 + $0x20] sm:$0xff] %v480
  %514 = vst [vmem:[%s4 + $0x28] sm:$0xff] %v482
  %515 = vst [vmem:[%s4 + $0x30] sm:$0xff] %v485
  %516 = vst [vmem:[%s4 + $0x38] sm:$0xff] %v487
  %517 = vst [vmem:[%s4 + $0x40] sm:$0xff] %v490
  %518 = vst [vmem:[%s4 + $0x48] sm:$0xff] %v492
  %519 = vst [vmem:[%s4 + $0x50] sm:$0xff] %v495
  %520 = vst [vmem:[%s4 + $0x58] sm:$0xff] %v497
  %521 = vst [vmem:[%s4 + $0x60] sm:$0xff] %v500
  %522 = vst [vmem:[%s4 + $0x68] sm:$0xff] %v502
  %523 = vst [vmem:[%s4 + $0x70] sm:$0xff] %v505
  %524 = vst [vmem:[%s4 + $0x78] sm:$0xff] %v507
  // Predicated region
  $region18: #{gcn_forward.1} parent=0 // pred_check
    _
  $region19: #{gcn_forward.1} parent=0 // pred_check_branch
    %526 = sbr.rel (0) target = $region21
  $region20: #{gcn_forward.1} parent=0 // pred_region
    _
  $region21: #{gcn_forward.1} parent=0 // pred_fallthru
    _
  // Predicated region
  $region22: #{gcn_forward.1} parent=0 // pred_check
    _
  $region23: #{gcn_forward.1} parent=0 // pred_check_branch
    %528 = sbr.rel (0) target = $region25
  $region24: #{gcn_forward.1} parent=0 // pred_region
    _
  $region25: #{gcn_forward.1} parent=0 // pred_fallthru
    _

</llo_original>
